<compile_context>
chip_gen: v5e
topology: v5e:2x2
jax: 0.10.0
libtpu: 0.0.40
codegen_flags: <defaults>
</compile_context>

<pallas_src>
import functools

import jax
import jax.numpy as jnp
from jax import lax
from jax.experimental import pallas as pl
from jax.experimental.pallas import tpu as pltpu


# --------------------------------------------------------------------------- utils
def _round_up(a, m):
    return (a + m - 1) // m * m


def _choose_blk(n_aligned, desired):
    """Largest multiple of 128 <= desired that divides n_aligned (>= 128)."""
    blk = max(128, min(desired, n_aligned) // 128 * 128)
    while n_aligned % blk:
        blk -= 128
    return blk


# --------------------------------------------------------------------------- kernels
def _support_kernel(x_ref, w_ref, o_ref):
    # support row-block = x_block @ W  (bf16 operands, f32 accumulation, bf16 out)
    o_ref[...] = jnp.dot(
        x_ref[...].astype(jnp.bfloat16),
        w_ref[...].astype(jnp.bfloat16),
        preferred_element_type=jnp.float32,
    ).astype(o_ref.dtype)


def _gconv_kernel(adj_ref, s_ref, b_ref, h_ref, acc_ref, *, blk, support_resident):
    # h row-block = relu( sum_k adj[i,k] @ support[k] + b )
    k = pl.program_id(1)

    @pl.when(k == 0)
    def _():
        acc_ref[...] = jnp.zeros_like(acc_ref)

    if support_resident:
        # support lives fully in VMEM; slice the k-th row block in-kernel.
        start = pl.multiple_of(k * blk, 128)
        s_blk = s_ref[pl.ds(start, blk), :]
    else:
        s_blk = s_ref[...]

    acc_ref[...] += jnp.dot(
        adj_ref[...].astype(jnp.bfloat16), s_blk,
        preferred_element_type=jnp.float32)

    @pl.when(k == pl.num_programs(1) - 1)
    def _():
        # bias + ReLU in f32 (v5e has no bf16 VPU); store h as bf16 MXU operand.
        h_ref[...] = jnp.maximum(acc_ref[...] + b_ref[...], 0.0).astype(h_ref.dtype)
        # TODO(synk): training-mode dropout (pltpu.prng_*) omitted; eval -> identity.


def _gram_resident_kernel(h_ref, o_ref, *, blk):
    # out tile = h_i @ h_j.T with h fully VMEM-resident (single HBM read of h).
    i = pl.program_id(0)
    j = pl.program_id(1)
    hi = h_ref[pl.ds(pl.multiple_of(i * blk, 128), blk), :]
    hj = h_ref[pl.ds(pl.multiple_of(j * blk, 128), blk), :]
    o_ref[...] = lax.dot_general(
        hi, hj, dimension_numbers=(((1,), (1,)), ((), ())),
        preferred_element_type=jnp.float32).astype(o_ref.dtype)
    # TODO(synk): output is symmetric; an i<=j triangular grid + mirrored writeback
    # would halve stage-C FLOPs (material mainly on v5e's 197 TF/s MXU).


def _gram_streamed_kernel(hi_ref, hj_ref, o_ref):
    # Fallback when h does not fit VMEM: stream (blk, f) row blocks.
    o_ref[...] = lax.dot_general(
        hi_ref[...], hj_ref[...], dimension_numbers=(((1,), (1,)), ((), ())),
        preferred_element_type=jnp.float32).astype(o_ref.dtype)


# --------------------------------------------------------------------------- wrapper
def structure_decoder(x, adj, w, b, *, blk_gconv=512, blk_gram=512,
                      out_dtype=jnp.float32,
                      vmem_limit_bytes=48 * 1024 * 1024):
    """x: (N, nhid) f32, adj: (N, N) f32, w: (nhid, nhid) f32, b: (nhid,) f32."""
    n, nhid = x.shape
    assert adj.shape == (n, n) and w.shape == (nhid, nhid) and b.shape == (nhid,)

    n_p = _round_up(n, 128)
    f_p = _round_up(nhid, 128)

    # Keep >= 2 blocks on the 'parallel' row axis when possible (v7x dual-TC),
    # cap the f32 Gram output tile (v7x 64 MiB VMEM), snap tiles to divisors of n_p.
    max_parallel = n_p // 2 if n_p >= 256 else n_p
    blk_b = _choose_blk(n_p, min(blk_gconv, max_parallel))
    blk_c = _choose_blk(n_p, min(blk_gram, max_parallel, 1024))
    gm_b = n_p // blk_b
    gm_c = n_p // blk_c

    # Operand prep: pad ONLY when shapes are not already lane/tile aligned.
    # adj (the N^2 array) is fed as-is in f32 in the aligned case and cast to bf16
    # inside the kernel, avoiding a separate pad+cast HBM pass.
    if n_p == n:
        adj_in = adj
    else:
        adj_in = jnp.zeros((n_p, n_p), jnp.bfloat16).at[:n, :n].set(
            adj.astype(jnp.bfloat16))
    if n_p == n and f_p == nhid:
        x_in = x
    else:
        x_in = jnp.zeros((n_p, f_p), jnp.bfloat16).at[:n, :nhid].set(
            x.astype(jnp.bfloat16))
    if f_p == nhid:
        w_in = w
        b_in = b.reshape(1, nhid).astype(jnp.float32)
    else:
        w_in = jnp.zeros((f_p, f_p), jnp.bfloat16).at[:nhid, :nhid].set(
            w.astype(jnp.bfloat16))
        b_in = jnp.zeros((1, f_p), jnp.float32).at[0, :nhid].set(
            b.astype(jnp.float32))

    # VMEM-residency gates for support / h (bf16, 2 bufs) inside the scoped limit.
    resident_budget = vmem_limit_bytes // 4
    sh_bytes = n_p * f_p * 2                      # bf16 (n_p, f_p)
    support_resident = 2 * sh_bytes <= resident_budget
    h_resident = 2 * sh_bytes <= resident_budget

    def cparams(sem):
        return pltpu.CompilerParams(
            dimension_semantics=sem, vmem_limit_bytes=vmem_limit_bytes)

    # ---- stage A: support = x @ W -------------------------------------------------
    support = pl.pallas_call(
        _support_kernel,
        out_shape=jax.ShapeDtypeStruct((n_p, f_p), jnp.bfloat16),
        grid_spec=pltpu.PrefetchScalarGridSpec(
            num_scalar_prefetch=0,
            grid=(gm_b,),
            in_specs=[pl.BlockSpec((blk_b, f_p), lambda i: (i, 0)),
                      pl.BlockSpec((f_p, f_p), lambda i: (0, 0))],
            out_specs=pl.BlockSpec((blk_b, f_p), lambda i: (i, 0))),
        compiler_params=cparams(("parallel",)),
        cost_estimate=pl.CostEstimate(
            flops=2 * n_p * f_p * f_p, transcendentals=0,
            bytes_accessed=(n_p * f_p * x_in.dtype.itemsize
                            + f_p * f_p * w_in.dtype.itemsize
                            + n_p * f_p * 2)),
    )(x_in, w_in)

    # ---- stage B: h = relu(adj @ support + b) --------------------------------------
    if support_resident:
        support_spec = pl.BlockSpec((n_p, f_p), lambda i, k: (0, 0))
    else:
        support_spec = pl.BlockSpec((blk_b, f_p), lambda i, k: (k, 0))

    gconv = functools.partial(_gconv_kernel, blk=blk_b,
                              support_resident=support_resident)
    h = pl.pallas_call(
        gconv,
        out_shape=jax.ShapeDtypeStruct((n_p, f_p), jnp.bfloat16),
        grid_spec=pltpu.PrefetchScalarGridSpec(
            num_scalar_prefetch=0,
            grid=(gm_b, gm_b),
            in_specs=[pl.BlockSpec((blk_b, blk_b), lambda i, k: (i, k)),
                      support_spec,
                      pl.BlockSpec((1, f_p), lambda i, k: (0, 0))],
            out_specs=pl.BlockSpec((blk_b, f_p), lambda i, k: (i, 0)),
            scratch_shapes=[pltpu.VMEM((blk_b, f_p), jnp.float32)]),
        compiler_params=cparams(("parallel", "arbitrary")),
        cost_estimate=pl.CostEstimate(
            flops=2 * n_p * n_p * f_p, transcendentals=0,
            bytes_accessed=(n_p * n_p * adj_in.dtype.itemsize
                            + n_p * f_p * 2 * (1 if support_resident else gm_b)
                            + f_p * 4
                            + n_p * f_p * 2)),
    )(adj_in, support, b_in)

    # ---- stage C: out = h @ h.T ----------------------------------------------------
    if h_resident:
        gram = functools.partial(_gram_resident_kernel, blk=blk_c)
        in_specs = [pl.BlockSpec((n_p, f_p), lambda i, j: (0, 0))]
        operands = (h,)
        h_read_bytes = n_p * f_p * 2
    else:
        gram = _gram_streamed_kernel
        in_specs = [pl.BlockSpec((blk_c, f_p), lambda i, j: (i, 0)),
                    pl.BlockSpec((blk_c, f_p), lambda i, j: (j, 0))]
        operands = (h, h)
        h_read_bytes = 2 * gm_c * n_p * f_p * 2

    out = pl.pallas_call(
        gram,
        out_shape=jax.ShapeDtypeStruct((n_p, n_p), out_dtype),
        grid_spec=pltpu.PrefetchScalarGridSpec(
            num_scalar_prefetch=0,
            grid=(gm_c, gm_c),
            in_specs=in_specs,
            out_specs=pl.BlockSpec((blk_c, blk_c), lambda i, j: (i, j))),
        compiler_params=cparams(("parallel", "parallel")),
        cost_estimate=pl.CostEstimate(
            flops=2 * n_p * n_p * f_p, transcendentals=0,
            bytes_accessed=h_read_bytes
                           + n_p * n_p * jnp.dtype(out_dtype).itemsize),
    )(*operands)

    # Avoid the full-copy slice when N is already aligned (padded rows of h hold
    # relu(b) != 0, so the slice is mandatory whenever n_p != n).
    if n_p != n:
        out = out[:n, :n]
    return out


# --------------------------------------------------------------------------- refs
def reference_bf16(x, adj, w, b):
    """Pure-JAX reference mimicking the kernel's bf16-operand / f32-accum path."""
    xb, ab, wb = (t.astype(jnp.bfloat16) for t in (x, adj, w))
    support = jnp.dot(xb, wb, preferred_element_type=jnp.float32).astype(jnp.bfloat16)
    h = jnp.maximum(jnp.dot(ab, support, preferred_element_type=jnp.float32) + b, 0.0)
    hb = h.astype(jnp.bfloat16)
    return lax.dot_general(hb, hb, (((1,), (1,)), ((), ())),
                           preferred_element_type=jnp.float32)


def reference_f32(x, adj, w, b):
    h = jnp.maximum(adj @ (x @ w) + b, 0.0)
    return h @ h.T


# --------------------------------------------------------------------------- main
if __name__ == "__main__":
    key = jax.random.PRNGKey(0)
    k_x, k_adj, k_w, k_b = jax.random.split(key, 4)

    N, NHID = 256, 128   # lane-dense small graph (N, nhid multiples of 128)
    x = jax.random.normal(k_x, (N, NHID), dtype=jnp.float32)

    # symmetric, row-normalized dense adjacency
    a = jax.random.uniform(k_adj, (N, N), dtype=jnp.float32)
    adj = (a + a.T) * 0.5
    adj = adj / jnp.sum(adj, axis=1, keepdims=True)

    # GraphConvolution init: uniform(-1/sqrt(out_features), 1/sqrt(out_features))
    bound = 1.0 / (NHID ** 0.5)
    w = jax.random.uniform(k_w, (NHID, NHID), jnp.float32, -bound, bound)
    b = jax.random.uniform(k_b, (NHID,), jnp.float32, -bound, bound)

    # With N=256 the gm>=2 clamp gives blk=128, so every stage exercises a
    # multi-step grid and the resident-VMEM paths for support/h.
    out = structure_decoder(x, adj, w, b)
    out = jax.block_until_ready(out)
    assert out.shape == (N, N)

    ref_b = reference_bf16(x, adj, w, b)
    ref_f = reference_f32(x, adj, w, b)
    assert jnp.allclose(out, ref_b, rtol=1e-2, atol=1e-2), "mismatch vs bf16 reference"
    assert jnp.allclose(out, ref_f, rtol=6e-2, atol=6e-2), "mismatch vs f32 reference"

    print("KERNEL_OK")
</pallas_src>

<mosaic_0001>
module attributes {stable_mosaic.version = 11 : i64} {
  func.func @_support_kernel(%arg0: i32, %arg1: memref<128x128xf32, #tpu.memory_space<vmem>>, %arg2: memref<128x128xf32, #tpu.memory_space<vmem>>, %arg3: memref<128x128xbf16, #tpu.memory_space<vmem>>) attributes {dimension_semantics = [#tpu.dimension_semantics<parallel>], iteration_bounds = array<i64: 2>, scalar_prefetch = 0 : i64, scratch_operands = 0 : i64, tpu.core_type = #tpu.core_type<tc>, window_params = [{transform_indices = @transform_0, window_bounds = array<i64: 128, 128>}, {pipeline_mode = #tpu.pipeline_mode<synchronous>, transform_indices = @transform_1, window_bounds = array<i64: 128, 128>}, {transform_indices = @transform_2, window_bounds = array<i64: 128, 128>}]} {
    %c0 = arith.constant 0 : index
    %c0_0 = arith.constant 0 : index
    %0 = vector.load %arg1[%c0, %c0_0] : memref<128x128xf32, #tpu.memory_space<vmem>>, vector<128x128xf32>
    %1 = arith.truncf %0 : vector<128x128xf32> to vector<128x128xbf16>
    %c0_1 = arith.constant 0 : index
    %c0_2 = arith.constant 0 : index
    %2 = vector.load %arg2[%c0_1, %c0_2] : memref<128x128xf32, #tpu.memory_space<vmem>>, vector<128x128xf32>
    %3 = arith.truncf %2 : vector<128x128xf32> to vector<128x128xbf16>
    %cst = arith.constant dense<0.000000e+00> : vector<128x128xf32>
    %4 = tpu.matmul %1, %3, %cst {dimension_numbers = #tpu.dot_dimension_numbers<[1], [0], [0], [1], [0, 0, 1, 1], [], []>} : vector<128x128xbf16>, vector<128x128xbf16>, vector<128x128xf32> -> vector<128x128xf32>
    %5 = arith.truncf %4 : vector<128x128xf32> to vector<128x128xbf16>
    %c0_3 = arith.constant 0 : index
    %c0_4 = arith.constant 0 : index
    %6 = vector.load %arg3[%c0_3, %c0_4] : memref<128x128xbf16, #tpu.memory_space<vmem>>, vector<128x128xbf16>
    tpu.vector_store %arg3[%c0_3, %c0_4], %5 {strides = array<i32>} : memref<128x128xbf16, #tpu.memory_space<vmem>>, vector<128x128xbf16>,
    return
  }
  func.func @transform_0(%arg0: i32) -> (i32, i32) {
    %c0_i32 = arith.constant 0 : i32
    %c0_i32_0 = arith.constant 0 : i32
    return %arg0, %c0_i32 : i32, i32
  }
  func.func @transform_1(%arg0: i32) -> (i32, i32) {
    %c0_i32 = arith.constant 0 : i32
    %c0_i32_0 = arith.constant 0 : i32
    %c0_i32_1 = arith.constant 0 : i32
    return %c0_i32, %c0_i32_0 : i32, i32
  }
  func.func @transform_2(%arg0: i32) -> (i32, i32) {
    %c0_i32 = arith.constant 0 : i32
    %c0_i32_0 = arith.constant 0 : i32
    return %arg0, %c0_i32 : i32, i32
  }
}

</mosaic_0001>

<llo_original>
// kernel: tpu_custom_call.1
$region0: #{tpu_custom_call.1}
  #allocation0 [shape = 'u32[]', space=smem, size = 0x4, offset = 0x4, fixed_abs, tag = 'smem constant byte address 0x4 - core index']
  #allocation1 [shape = 'u32[72,128]{1,0:T(1,128)}', space=vmem, size = 0x9000, scoped, tag = 'internal scratch']
  %s0 = inlined_call_operand.hbm [shape: f32[256,128], index: 0, kind: input, shape index: {}]
  %s1 = inlined_call_operand.hbm [shape: f32[128,128], index: 1, kind: input, shape index: {}]
  %s2 = inlined_call_operand.hbm [shape: bf16[256,128], index: 2, kind: output, shape index: {}]
  %s3 = sld [smem:[#allocation0]]
  $region49: #{tpu_custom_call.1} parent=0
    _
  %s5 = ssub.s32 1, %s3
  %s6 = scalar_select 0, %s5, %s3
  $region1: #{tpu_custom_call.1} parent=0
    #allocation2 [shape = 'u8[131072]{0}', space=vmem, size = 0x20000, scoped, tag = 'input window, operand 0']
    #allocation3 [shape = 's32[2]{0}', space=sflag, size = 0x8, scoped, tag = 'scoped memory for tpu_custom_call.1']
    #allocation4 [shape = 's32[2]{0}', space=sflag, size = 0x8, scoped, tag = 'scoped memory for tpu_custom_call.1']
    #allocation5 [shape = 'u8[65536]{0}', space=vmem, size = 0x10000, scoped, tag = 'input window, operand 1, single buffered']
    #allocation6 [shape = 's32[1]{0}', space=sflag, size = 0x4, scoped, tag = 'scoped memory for tpu_custom_call.1']
    #allocation7 [shape = 'u8[65536]{0}', space=vmem, size = 0x10000, scoped, tag = 'output window, operand 0']
    %7 = vsyncpa [#allocation3], 0
    %s8 = scalar_lea.sflag [#allocation3], 1
    %9 = vsyncpa %s8, 0
    %10 = vsyncpa [#allocation6], 0
    %11 = vsyncpa [#allocation4], 0
    %s12 = scalar_lea.sflag [#allocation4], 1
    %13 = vsyncpa %s12, 0
    loop: start=0, step=1, limit=4
    $region2: #{tpu_custom_call.1} parent=1 // loop_pre_header
      _
    $region3: #{tpu_custom_call.1} parent=1 // loop_header
      %s15 = sphi 0, %s19
      %p16 = scmp.ge.s32.totalorder %s15, 4
      %s25 = sphi 0, %s27
      %s28 = sphi 0, %s25
      %s29 = sphi 0, %s28
      %s45 = sphi 0, %s29
      %s49 = sphi 0, %s49
      %s51 = sphi 0, %s49
      %s52 = sphi 0, %s51
      %s66 = sphi 0, %s52
      %s72 = sphi 0, %s74
      %s75 = sphi 0, %s72
      %s76 = sphi 0, %s75
      %s92 = sphi 0, %s76
    $region4: #{tpu_custom_call.1} parent=1 // loop_header_branch
      %18 = sbr.rel (%p16) target = $region8
    $region5: #{tpu_custom_call.1} parent=1 // loop_body
      %s20 = ssub.s32 %s15, 1
      %s21 = ssub.s32 %s15, 2
      %s22 = sadd.s32 %s15, 1
      %s23 = ssub.s32 %s15, %s22
      %p24 = scmp.eq.s32.totalorder %s23, 0
      %s26 = sadd.s32 %s25, 1
      %s27 = scalar_select %p24, %s25, %s26
      %p30 = pneg %p24
      %p31 = scmp.eq.s32.totalorder %s15, 1
      %p32 = por %p30, %p31
      %p33 = scmp.ne.s32.totalorder %s25, %s28
      %p34 = scmp.eq.s32.totalorder %s15, 0
      %p35 = por %p33, %p34
      %p36 = scmp.ne.s32.totalorder %s25, %s28
      %p37 = scmp.eq.s32.totalorder %s20, 1
      %p38 = por %p36, %p37
      %p39 = scmp.ne.s32.totalorder %s28, %s29
      %p40 = scmp.eq.s32.totalorder %s20, 0
      %p41 = por %p39, %p40
      %p42 = scmp.ne.s32.totalorder %s28, %s29
      %p43 = scmp.eq.s32.totalorder %s21, 1
      %p44 = por %p42, %p43
      %p46 = scmp.ne.s32.totalorder %s29, %s45
      %p47 = scmp.eq.s32.totalorder %s21, 0
      %p48 = por %p46, %p47
      %s50 = sadd.s32 %s49, 1
      %p53 = scmp.eq.s32.totalorder %s15, 1
      %p54 = scmp.ne.s32.totalorder %s49, %s51
      %p55 = scmp.eq.s32.totalorder %s15, 0
      %p56 = por %p54, %p55
      %p57 = scmp.ne.s32.totalorder %s49, %s51
      %p58 = scmp.eq.s32.totalorder %s20, 1
      %p59 = por %p57, %p58
      %p60 = scmp.ne.s32.totalorder %s51, %s52
      %p61 = scmp.eq.s32.totalorder %s20, 0
      %p62 = por %p60, %p61
      %p63 = scmp.ne.s32.totalorder %s51, %s52
      %p64 = scmp.eq.s32.totalorder %s21, 1
      %p65 = por %p63, %p64
      %p67 = scmp.ne.s32.totalorder %s52, %s66
      %p68 = scmp.eq.s32.totalorder %s21, 0
      %p69 = por %p67, %p68
      %s70 = ssub.s32 %s15, %s22
      %p71 = scmp.eq.s32.totalorder %s70, 0
      %s73 = sadd.s32 %s72, 1
      %s74 = scalar_select %p71, %s72, %s73
      %p77 = pneg %p71
      %p78 = scmp.eq.s32.totalorder %s15, 1
      %p79 = por %p77, %p78
      %p80 = scmp.ne.s32.totalorder %s72, %s75
      %p81 = scmp.eq.s32.totalorder %s15, 0
      %p82 = por %p80, %p81
      %p83 = scmp.ne.s32.totalorder %s72, %s75
      %p84 = scmp.eq.s32.totalorder %s20, 1
      %p85 = por %p83, %p84
      %p86 = scmp.ne.s32.totalorder %s75, %s76
      %p87 = scmp.eq.s32.totalorder %s20, 0
      %p88 = por %p86, %p87
      %p89 = scmp.ne.s32.totalorder %s75, %s76
      %p90 = scmp.eq.s32.totalorder %s21, 1
      %p91 = por %p89, %p90
      %p93 = scmp.ne.s32.totalorder %s76, %s92
      %p94 = scmp.eq.s32.totalorder %s21, 0
      %p95 = por %p93, %p94
      %p96 = scmp.le.s32.totalorder 1, %s15
      %p97 = scmp.lt.s32.totalorder %s15, 3
      %p98 = pnand %p96, %p97
      %p99 = pneg %p98
      // Predicated region
      $region9: #{tpu_custom_call.1} parent=5 // pred_check
        _
      $region10: #{tpu_custom_call.1} parent=5 // pred_check_branch
        %101 = sbr.rel (%p98) target = $region12
      $region11: #{tpu_custom_call.1} parent=5 // pred_region
        %s102 = ssub.s32 %s15, 1
        // Predicated region
        $region13: #{tpu_custom_call.1} parent=11 // pred_check
          %p103 = pneg %p62
        $region14: #{tpu_custom_call.1} parent=11 // pred_check_branch
          %105 = sbr.rel (%p103) target = $region16
        $region15: #{tpu_custom_call.1} parent=11 // pred_region
          %107 = vsyncadd [#allocation6], 0
          %s108 = sshll.u32 %s1, 4
          %s109 = int_to_ptr.hbm [resolvable:$true] %s108
          %s110 = sshll.u32 [#allocation5], 4
          %s111 = int_to_ptr.vmem [resolvable:$true] %s110
          %116 = dma.hbm_to_vmem [thread:$0]  %s109, 2048, %s111, [#allocation6], 128, 128, 8
        $region16: #{tpu_custom_call.1} parent=11 // pred_fallthru
          _
      $region12: #{tpu_custom_call.1} parent=5 // pred_fallthru
        _
      %p117 = scmp.lt.s32.totalorder %s15, 2
      // Predicated region
      $region17: #{tpu_custom_call.1} parent=5 // pred_check
        %p118 = pneg %p117
      $region18: #{tpu_custom_call.1} parent=5 // pred_check_branch
        %120 = sbr.rel (%p118) target = $region20
      $region19: #{tpu_custom_call.1} parent=5 // pred_region
        // Predicated region
        $region21: #{tpu_custom_call.1} parent=19 // pred_check
          %p121 = pneg %p35
        $region22: #{tpu_custom_call.1} parent=19 // pred_check_branch
          %123 = sbr.rel (%p121) target = $region24
        $region23: #{tpu_custom_call.1} parent=19 // pred_region
          %s124 = sand.u32 %s25, 1
          %s125 = scalar_lea.sflag [#allocation3], %s124
          %s126 = sand.u32 %s25, 1
          %s127 = smul.addr %s126, 128
          %s128 = scalar_lea.vmem [#allocation2], %s127
          %s129 = smul.u32 16, %s15
          %131 = vsyncadd %s125, 0
          %s132 = smul.addr %s129, 8
          %s133 = scalar_lea.hbm %s0, %s132
          %s134 = sshll.u32 %s133, 4
          %s135 = int_to_ptr.hbm [resolvable:$true] %s134
          %s136 = sshll.u32 %s128, 4
          %s137 = int_to_ptr.vmem [resolvable:$true] %s136
          %142 = dma.hbm_to_vmem [thread:$0]  %s135, 2048, %s137, %s125, 128, 128, 8
        $region24: #{tpu_custom_call.1} parent=19 // pred_fallthru
          _
      $region20: #{tpu_custom_call.1} parent=5 // pred_fallthru
        _
      %p143 = scmp.le.s32.totalorder 1, %s15
      %p144 = scmp.lt.s32.totalorder %s15, 3
      %p145 = pnand %p143, %p144
      %p146 = pneg %p145
      // Predicated region
      $region25: #{tpu_custom_call.1} parent=5 // pred_check
        _
      $region26: #{tpu_custom_call.1} parent=5 // pred_check_branch
        %148 = sbr.rel (%p145) target = $region28
      $region27: #{tpu_custom_call.1} parent=5 // pred_region
        %s149 = ssub.s32 %s15, 1
        %s150 = sand.u32 %s28, 1
        %s151 = scalar_lea.sflag [#allocation3], %s150
        %s152 = sand.u32 %s28, 1
        %s153 = smul.addr %s152, 128
        %s154 = scalar_lea.vmem [#allocation2], %s153
        // Predicated region
        $region29: #{tpu_custom_call.1} parent=27 // pred_check
          %p155 = pneg %p41
        $region30: #{tpu_custom_call.1} parent=27 // pred_check_branch
          %157 = sbr.rel (%p155) target = $region32
        $region31: #{tpu_custom_call.1} parent=27 // pred_region
          %159 = dma.done %s151, 2048
        $region32: #{tpu_custom_call.1} parent=27 // pred_fallthru
          _
        // Predicated region
        $region33: #{tpu_custom_call.1} parent=27 // pred_check
          %p160 = pneg %p62
        $region34: #{tpu_custom_call.1} parent=27 // pred_check_branch
          %162 = sbr.rel (%p160) target = $region36
        $region35: #{tpu_custom_call.1} parent=27 // pred_region
          %164 = dma.done [#allocation6], 2048
        $region36: #{tpu_custom_call.1} parent=27 // pred_fallthru
          _
        %s165 = sand.u32 %s28, 1
        %s166 = scalar_lea.sflag [#allocation3], %s165
        %s167 = sand.u32 %s28, 1
        %s168 = smul.addr %s167, 128
        %s169 = scalar_lea.vmem [#allocation2], %s168
        %p170 = pneg %p41
        %p171 = pneg %p38
        %p172 = pneg %p62
        %p173 = pneg %p59
        %p174 = pneg %p88
        %p175 = pneg %p85
        %s176 = sand.u32 %s75, 1
        %s177 = scalar_lea.sflag [#allocation4], %s176
        %s178 = sand.u32 %s75, 1
        %s179 = smul.addr %s178, 64
        %s180 = scalar_lea.vmem [#allocation7], %s179
        %s181 = smul.u32 16, %s20
        %s182 = smul.u32 16, %s20
        %v183 = vld [vmem:[%s154] sm:$0xff]
        %v184 = vld [vmem:[%s154 + $0x8] sm:$0xff]
        %v185 = vld [vmem:[%s154 + $0x10] sm:$0xff]
        %v186 = vld [vmem:[%s154 + $0x18] sm:$0xff]
        %v187 = vld [vmem:[%s154 + $0x20] sm:$0xff]
        %v188 = vld [vmem:[%s154 + $0x28] sm:$0xff]
        %v189 = vld [vmem:[%s154 + $0x30] sm:$0xff]
        %v190 = vld [vmem:[%s154 + $0x38] sm:$0xff]
        %v191 = vld [vmem:[%s154 + $0x40] sm:$0xff]
        %v192 = vld [vmem:[%s154 + $0x48] sm:$0xff]
        %v193 = vld [vmem:[%s154 + $0x50] sm:$0xff]
        %v194 = vld [vmem:[%s154 + $0x58] sm:$0xff]
        %v195 = vld [vmem:[%s154 + $0x60] sm:$0xff]
        %v196 = vld [vmem:[%s154 + $0x68] sm:$0xff]
        %v197 = vld [vmem:[%s154 + $0x70] sm:$0xff]
        %v198 = vld [vmem:[%s154 + $0x78] sm:$0xff]
        %v199 = vpack.c.bf16 %v184, %v183
        %v200 = vpack.c.bf16 %v186, %v185
        %v201 = vpack.c.bf16 %v188, %v187
        %v202 = vpack.c.bf16 %v190, %v189
        %v203 = vpack.c.bf16 %v192, %v191
        %v204 = vpack.c.bf16 %v194, %v193
        %v205 = vpack.c.bf16 %v196, %v195
        %v206 = vpack.c.bf16 %v198, %v197
        %v207 = vld [vmem:[#allocation5] sm:$0xff]
        %v208 = vld [vmem:[#allocation5 + $0x8] sm:$0xff]
        %v209 = vld [vmem:[#allocation5 + $0x10] sm:$0xff]
        %v210 = vld [vmem:[#allocation5 + $0x18] sm:$0xff]
        %v211 = vld [vmem:[#allocation5 + $0x20] sm:$0xff]
        %v212 = vld [vmem:[#allocation5 + $0x28] sm:$0xff]
        %v213 = vld [vmem:[#allocation5 + $0x30] sm:$0xff]
        %v214 = vld [vmem:[#allocation5 + $0x38] sm:$0xff]
        %v215 = vld [vmem:[#allocation5 + $0x40] sm:$0xff]
        %v216 = vld [vmem:[#allocation5 + $0x48] sm:$0xff]
        %v217 = vld [vmem:[#allocation5 + $0x50] sm:$0xff]
        %v218 = vld [vmem:[#allocation5 + $0x58] sm:$0xff]
        %v219 = vld [vmem:[#allocation5 + $0x60] sm:$0xff]
        %v220 = vld [vmem:[#allocation5 + $0x68] sm:$0xff]
        %v221 = vld [vmem:[#allocation5 + $0x70] sm:$0xff]
        %v222 = vld [vmem:[#allocation5 + $0x78] sm:$0xff]
        %v223 = vpack.c.bf16 %v208, %v207
        %v224 = vpack.c.bf16 %v210, %v209
        %v225 = vpack.c.bf16 %v212, %v211
        %v226 = vpack.c.bf16 %v214, %v213
        %v227 = vpack.c.bf16 %v216, %v215
        %v228 = vpack.c.bf16 %v218, %v217
        %v229 = vpack.c.bf16 %v220, %v219
        %v230 = vpack.c.bf16 %v222, %v221
        %231 = vmatpush.bf16.msra.mxu0 %v230
        %232 = vmatpush.bf16.msra.mxu0 %v229
        %233 = vmatpush.bf16.msra.mxu0 %v228
        %234 = vmatpush.bf16.msra.mxu0 %v227
        %235 = vmatpush.bf16.msra.mxu0 %v226
        %236 = vmatpush.bf16.msra.mxu0 %v225
        %237 = vmatpush.bf16.msra.mxu0 %v224
        %238 = vmatpush.bf16.msra.mxu0 %v223
        %239 = vmatmul.bf16.gmra.mxu0 %v199
        %v240 = vpop.f32.mrf.mxu0
        %v241 = vadd.f32 0.0, %v240
        %v242 = vpop.f32.mrf.mxu0
        %v243 = vadd.f32 0.0, %v242
        %244 = vmatmul.bf16.gmra.mxu0 %v200
        %v245 = vpop.f32.mrf.mxu0
        %v246 = vadd.f32 0.0, %v245
        %v247 = vpop.f32.mrf.mxu0
        %v248 = vadd.f32 0.0, %v247
        %249 = vmatmul.bf16.gmra.mxu0 %v201
        %v250 = vpop.f32.mrf.mxu0
        %v251 = vadd.f32 0.0, %v250
        %v252 = vpop.f32.mrf.mxu0
        %v253 = vadd.f32 0.0, %v252
        %254 = vmatmul.bf16.gmra.mxu0 %v202
        %v255 = vpop.f32.mrf.mxu0
        %v256 = vadd.f32 0.0, %v255
        %v257 = vpop.f32.mrf.mxu0
        %v258 = vadd.f32 0.0, %v257
        %259 = vmatmul.bf16.gmra.mxu0 %v203
        %v260 = vpop.f32.mrf.mxu0
        %v261 = vadd.f32 0.0, %v260
        %v262 = vpop.f32.mrf.mxu0
        %v263 = vadd.f32 0.0, %v262
        %264 = vmatmul.bf16.gmra.mxu0 %v204
        %v265 = vpop.f32.mrf.mxu0
        %v266 = vadd.f32 0.0, %v265
        %v267 = vpop.f32.mrf.mxu0
        %v268 = vadd.f32 0.0, %v267
        %269 = vmatmul.bf16.gmra.mxu0 %v205
        %v270 = vpop.f32.mrf.mxu0
        %v271 = vadd.f32 0.0, %v270
        %v272 = vpop.f32.mrf.mxu0
        %v273 = vadd.f32 0.0, %v272
        %274 = vmatmul.bf16.gmra.mxu0 %v206
        %v275 = vpop.f32.mrf.mxu0
        %v276 = vadd.f32 0.0, %v275
        %v277 = vpop.f32.mrf.mxu0
        %v278 = vadd.f32 0.0, %v277
        %279 = vdwg.mxu0
        %v280 = vpack.c.bf16 %v241, %v241
        %v281 = vpack.c.bf16 %v243, %v243
        %v282 = vpack.c.bf16 %v246, %v246
        %v283 = vpack.c.bf16 %v248, %v248
        %v284 = vpack.c.bf16 %v251, %v251
        %v285 = vpack.c.bf16 %v253, %v253
        %v286 = vpack.c.bf16 %v256, %v256
        %v287 = vpack.c.bf16 %v258, %v258
        %v288 = vpack.c.bf16 %v261, %v261
        %v289 = vpack.c.bf16 %v263, %v263
        %v290 = vpack.c.bf16 %v266, %v266
        %v291 = vpack.c.bf16 %v268, %v268
        %v292 = vpack.c.bf16 %v271, %v271
        %v293 = vpack.c.bf16 %v273, %v273
        %v294 = vpack.c.bf16 %v276, %v276
        %v295 = vpack.c.bf16 %v278, %v278
        %296 = vst [vmem:[%s180] sm:$0xf] %v280
        %297 = vst [vmem:[%s180 + $0x4] sm:$0xf] %v281
        %298 = vst [vmem:[%s180 + $0x8] sm:$0xf] %v282
        %299 = vst [vmem:[%s180 + $0xc] sm:$0xf] %v283
        %300 = vst [vmem:[%s180 + $0x10] sm:$0xf] %v284
        %301 = vst [vmem:[%s180 + $0x14] sm:$0xf] %v285
        %302 = vst [vmem:[%s180 + $0x18] sm:$0xf] %v286
        %303 = vst [vmem:[%s180 + $0x1c] sm:$0xf] %v287
        %304 = vst [vmem:[%s180 + $0x20] sm:$0xf] %v288
        %305 = vst [vmem:[%s180 + $0x24] sm:$0xf] %v289
        %306 = vst [vmem:[%s180 + $0x28] sm:$0xf] %v290
        %307 = vst [vmem:[%s180 + $0x2c] sm:$0xf] %v291
        %308 = vst [vmem:[%s180 + $0x30] sm:$0xf] %v292
        %309 = vst [vmem:[%s180 + $0x34] sm:$0xf] %v293
        %310 = vst [vmem:[%s180 + $0x38] sm:$0xf] %v294
        %311 = vst [vmem:[%s180 + $0x3c] sm:$0xf] %v295
        %s312 = sand.u32 %s75, 1
        %s313 = scalar_lea.sflag [#allocation4], %s312
        %s314 = sand.u32 %s75, 1
        %s315 = smul.addr %s314, 64
        %s316 = scalar_lea.vmem [#allocation7], %s315
        // Predicated region
        $region37: #{tpu_custom_call.1} parent=27 // pred_check
          %p317 = pneg %p85
        $region38: #{tpu_custom_call.1} parent=27 // pred_check_branch
          %319 = sbr.rel (%p317) target = $region40
        $region39: #{tpu_custom_call.1} parent=27 // pred_region
          %s320 = smul.u32 16, %s20
          %322 = vsyncadd %s313, 0
          %s323 = smul.addr %s320, 4
          %s324 = scalar_lea.hbm %s2, %s323
          %s325 = sshll.u32 %s316, 4
          %s326 = int_to_ptr.vmem [resolvable:$true] %s325
          %s327 = sshll.u32 %s324, 4
          %s328 = int_to_ptr.hbm [resolvable:$true] %s327
          %333 = dma.vmem_to_hbm [thread:$0]  %s326, 1024, %s328, %s313, 64, 64, 4
        $region40: #{tpu_custom_call.1} parent=27 // pred_fallthru
          _
      $region28: #{tpu_custom_call.1} parent=5 // pred_fallthru
        _
      %p334 = scmp.le.s32.totalorder 2, %s15
      // Predicated region
      $region41: #{tpu_custom_call.1} parent=5 // pred_check
        %p335 = pneg %p334
      $region42: #{tpu_custom_call.1} parent=5 // pred_check_branch
        %337 = sbr.rel (%p335) target = $region44
      $region43: #{tpu_custom_call.1} parent=5 // pred_region
        %s338 = ssub.s32 %s15, 2
        // Predicated region
        $region45: #{tpu_custom_call.1} parent=43 // pred_check
          %p339 = pneg %p91
        $region46: #{tpu_custom_call.1} parent=43 // pred_check_branch
          %341 = sbr.rel (%p339) target = $region48
        $region47: #{tpu_custom_call.1} parent=43 // pred_region
          %s342 = sand.u32 %s76, 1
          %s343 = scalar_lea.sflag [#allocation4], %s342
          %s344 = sand.u32 %s76, 1
          %s345 = smul.addr %s344, 64
          %s346 = scalar_lea.vmem [#allocation7], %s345
          %348 = dma.done %s343, 1024
        $region48: #{tpu_custom_call.1} parent=43 // pred_fallthru
          _
      $region44: #{tpu_custom_call.1} parent=5 // pred_fallthru
        _
    $region6: #{tpu_custom_call.1} parent=1 // loop_footer
      %s19 = sadd.s32 1, %s15
    $region7: #{tpu_custom_call.1} parent=1 // loop_footer_branch
      %14 = sbr.rel target = $region3
    $region8: #{tpu_custom_call.1} parent=1 // loop_exit
      _
    %349 = vsyncpa [#allocation3], 1
    %s350 = scalar_lea.sflag [#allocation3], 1
    %351 = vsyncpa %s350, 1
    %352 = vsyncpa [#allocation6], 1
    %353 = vsyncpa [#allocation4], 1
    %s354 = scalar_lea.sflag [#allocation4], 1
    %355 = vsyncpa %s354, 1

</llo_original>
